<compile_context>
chip_gen: v5e
topology: v5e:2x2
jax: 0.10.0
libtpu: 0.0.40
codegen_flags: <defaults>
</compile_context>

<pallas_src>
import functools

import jax
import jax.numpy as jnp
from jax.experimental import pallas as pl
from jax.experimental.pallas import tpu as pltpu

MOMENTUM = 0.1


# --------------------------------------------------------------------------- #
# sizing helpers
# --------------------------------------------------------------------------- #
def _vmem_limit_bytes():
    """Scoped-VMEM limit: 3/4 of physical capacity (v5e/v6e 128 MiB, v7x 64 MiB/TC)."""
    try:
        cap = pltpu.get_tpu_info().vmem_capacity_bytes
    except Exception:
        cap = 128 * 1024 * 1024
    return int(cap * 3 // 4)


def _block_budget(vmem_limit):
    """Bytes budget for a single f32 x-block.

    Resident set ~= (x + out) * double-buffer = 4 blocks (+ tiny rm buffers), so
    vmem_limit // 5 keeps us ~80% of the granted scoped VMEM."""
    return max(1 << 20, vmem_limit // 5)


def _lane_tile(total_lanes, rows, budget_bytes):
    """Last-dim tile: full extent if affordable, else a multiple of 128 sized so an
    f32 block of (rows, tile) fits the budget."""
    if total_lanes <= 128:
        return total_lanes
    max_lanes = max(128, (budget_bytes // (4 * max(rows, 1))) // 128 * 128)
    return total_lanes if total_lanes <= max_lanes else max_lanes


def _sublane_tile(total, per_unit_bytes, budget_bytes):
    """Second-minor tile: full extent if affordable, else a multiple of 8."""
    if total <= 8:
        return total
    max_units = max(8, (budget_bytes // max(per_unit_bytes, 1)) // 8 * 8)
    return total if total <= max_units else max_units


def _split_for_grid(total, tile, granularity, min_steps=4):
    """If a tile covers the whole extent, shrink it (to a multiple of `granularity`)
    so the grid axis gets >= min_steps steps when possible: keeps both v7x
    TensorCores busy and restores DMA/compute overlap via double-buffering."""
    if tile < total or total <= granularity:
        return tile
    steps = min(min_steps, total // granularity)
    target = pl.cdiv(pl.cdiv(total, steps), granularity) * granularity
    return max(granularity, min(tile, target))


# --------------------------------------------------------------------------- #
# kernels
# --------------------------------------------------------------------------- #
def _cvn_train_kernel(x_ref, rm_ref, out_ref, new_rm_ref):
    # x_ref: (N*C, thw) — reduce over all rows (VPU cross-sublane adds); lanes (H*W
    # tile) are kept, so every grid step is fully independent.
    x = x_ref[...].astype(jnp.float32)
    mean = jnp.mean(x, axis=0, keepdims=True)                      # (1, thw)
    out_ref[...] = (x - mean).astype(out_ref.dtype)
    new_rm_ref[...] = (
        (1.0 - MOMENTUM) * rm_ref[...].astype(jnp.float32) + MOMENTUM * mean
    ).astype(new_rm_ref.dtype)


def _svn_train_kernel(x_ref, rm_ref, out_ref, new_rm_ref):
    # x_ref: (N, tc, H*W) — reduce over batch (axis 0) and the lane-dense spatial
    # axis (axis 2, XLU cross-lane reduce — free slot, no MXU in this kernel).
    x = x_ref[...].astype(jnp.float32)
    mean = jnp.mean(x, axis=(0, 2), keepdims=True)                 # (1, tc, 1)
    out_ref[...] = (x - mean).astype(out_ref.dtype)
    new_rm_ref[...] = (
        (1.0 - MOMENTUM) * rm_ref[...].astype(jnp.float32) + MOMENTUM * mean
    ).astype(new_rm_ref.dtype)


def _sub_kernel(x_ref, m_ref, o_ref):
    # Pure streaming subtract; m broadcasts ((1,1), (1,tl), (1,tc,1) or (1,tc,tl)).
    o_ref[...] = (
        x_ref[...].astype(jnp.float32) - m_ref[...].astype(jnp.float32)
    ).astype(o_ref.dtype)


def _cvn_sum_kernel(x_ref, sum_ref, *, nc_total, tr):
    # Grid = (lane tiles [parallel], row tiles [arbitrary/reduction]).
    j = pl.program_id(1)

    @pl.when(j == 0)
    def _():
        sum_ref[...] = jnp.zeros_like(sum_ref)

    x = x_ref[...].astype(jnp.float32)                             # (tr, tl)
    row = jax.lax.broadcasted_iota(jnp.int32, x.shape, 0) + j * tr
    x = jnp.where(row < nc_total, x, 0.0)                          # mask padded rows
    sum_ref[...] += jnp.sum(x, axis=0, keepdims=True)              # (1, tl)


def _svn_sum_kernel(x_ref, sum_ref, *, hw_total, tl):
    # Grid = (channel tiles [parallel], lane tiles [arbitrary/reduction]).
    j = pl.program_id(1)

    @pl.when(j == 0)
    def _():
        sum_ref[...] = jnp.zeros_like(sum_ref)

    x = x_ref[...].astype(jnp.float32)                             # (N, tc, tl)
    lane = jax.lax.broadcasted_iota(jnp.int32, x.shape, 2) + j * tl
    x = jnp.where(lane < hw_total, x, 0.0)                         # mask padded lanes
    sum_ref[...] += jnp.sum(x, axis=(0, 2), keepdims=True)         # (1, tc, 1)


# --------------------------------------------------------------------------- #
# streaming subtract (shared by eval and the two-pass training fallbacks)
# --------------------------------------------------------------------------- #
def _subtract_2d(x, m2):
    """out = x - m2 where m2: (1, HWm), HWm in {1, H*W} (broadcast over N and C)."""
    N, C, H, W = x.shape
    NC, HW = N * C, H * W
    HWm = m2.shape[1]
    vmem_limit = _vmem_limit_bytes()
    budget = _block_budget(vmem_limit)

    xr = x.reshape(NC, HW)
    tl = _lane_tile(HW, 8, budget)
    tl = _split_for_grid(HW, tl, 128, 2)
    tr = _sublane_tile(NC, tl * 4, budget)
    tr = _split_for_grid(NC, tr, 8, 2)
    grid = (pl.cdiv(HW, tl), pl.cdiv(NC, tr))

    if HWm == HW:
        m_spec = pl.BlockSpec((1, tl), lambda i, j: (0, i))   # constant along inner j
    else:                                                     # scalar mean
        m_spec = pl.BlockSpec((1, 1), lambda i, j: (0, 0))

    out2d = pl.pallas_call(
        _sub_kernel,
        grid=grid,
        in_specs=[pl.BlockSpec((tr, tl), lambda i, j: (j, i)), m_spec],
        out_specs=pl.BlockSpec((tr, tl), lambda i, j: (j, i)),
        out_shape=jax.ShapeDtypeStruct((NC, HW), x.dtype),
        input_output_aliases={0: 0},
        compiler_params=pltpu.CompilerParams(
            dimension_semantics=("parallel", "parallel"),
            vmem_limit_bytes=vmem_limit,
        ),
    )(xr, m2)
    return out2d.reshape(N, C, H, W)


def _subtract_3d(x, m3):
    """out = x - m3 where m3: (1, C, HWm), HWm in {1, H*W} (per-channel mean)."""
    N, C, H, W = x.shape
    HW = H * W
    HWm = m3.shape[2]
    vmem_limit = _vmem_limit_bytes()
    budget = _block_budget(vmem_limit)

    xr = x.reshape(N, C, HW)
    tl = _lane_tile(HW, N * min(C, 8), budget)
    tl = _split_for_grid(HW, tl, 128, 2)
    tc = _sublane_tile(C, N * tl * 4, budget)
    tc = _split_for_grid(C, tc, 8, 2)
    grid = (pl.cdiv(C, tc), pl.cdiv(HW, tl))

    if HWm == HW:
        m_spec = pl.BlockSpec((1, tc, tl), lambda i, j: (0, i, j))
    else:                                                     # (1, C, 1) per-channel
        m_spec = pl.BlockSpec((1, tc, 1), lambda i, j: (0, i, 0))  # resident along j

    out3d = pl.pallas_call(
        _sub_kernel,
        grid=grid,
        in_specs=[pl.BlockSpec((N, tc, tl), lambda i, j: (0, i, j)), m_spec],
        out_specs=pl.BlockSpec((N, tc, tl), lambda i, j: (0, i, j)),
        out_shape=jax.ShapeDtypeStruct((N, C, HW), x.dtype),
        input_output_aliases={0: 0},
        compiler_params=pltpu.CompilerParams(
            dimension_semantics=("parallel", "parallel"),
            vmem_limit_bytes=vmem_limit,
        ),
    )(xr, m3)
    return out3d.reshape(N, C, H, W)


# --------------------------------------------------------------------------- #
# two-pass training fallbacks (grid-reduction sum + streaming subtract)
# --------------------------------------------------------------------------- #
def _cvn_train_two_pass(x, running_mean, vmem_limit, budget):
    N, C, H, W = x.shape
    NC, HW = N * C, H * W
    xr = x.reshape(NC, HW)

    tl = _lane_tile(HW, 8, budget)
    tl = _split_for_grid(HW, tl, 128, 2)
    tr = _sublane_tile(NC, tl * 4, budget)
    grid = (pl.cdiv(HW, tl), pl.cdiv(NC, tr))

    sums = pl.pallas_call(
        functools.partial(_cvn_sum_kernel, nc_total=NC, tr=tr),
        grid=grid,
        in_specs=[pl.BlockSpec((tr, tl), lambda i, j: (j, i))],
        out_specs=pl.BlockSpec((1, tl), lambda i, j: (0, i)),   # accumulator over j
        out_shape=jax.ShapeDtypeStruct((1, HW), jnp.float32),
        compiler_params=pltpu.CompilerParams(
            dimension_semantics=("parallel", "arbitrary"),
            vmem_limit_bytes=vmem_limit,
        ),
    )(xr)

    mean2 = sums / float(NC)                                   # (1, HW), tiny XLA op
    out = _subtract_2d(x, mean2)
    mean4 = mean2.reshape(1, 1, H, W)
    new_rm = (1.0 - MOMENTUM) * running_mean.astype(jnp.float32) + MOMENTUM * mean4
    return out, new_rm


def _svn_train_two_pass(x, running_mean, vmem_limit, budget):
    N, C, H, W = x.shape
    HW = H * W
    xr = x.reshape(N, C, HW)

    # TODO(synk): for extreme N where even an (N, 8, 128) f32 block overflows the
    # budget, add an N-axis reduction grid as well.
    tc = _sublane_tile(C, N * 128 * 4, budget)
    tl = _lane_tile(HW, N * tc, budget)
    tl = _split_for_grid(HW, tl, 128, 2)
    grid = (pl.cdiv(C, tc), pl.cdiv(HW, tl))

    sums = pl.pallas_call(
        functools.partial(_svn_sum_kernel, hw_total=HW, tl=tl),
        grid=grid,
        in_specs=[pl.BlockSpec((N, tc, tl), lambda i, j: (0, i, j))],
        out_specs=pl.BlockSpec((1, tc, 1), lambda i, j: (0, i, 0)),  # accumulator
        out_shape=jax.ShapeDtypeStruct((1, C, 1), jnp.float32),
        compiler_params=pltpu.CompilerParams(
            dimension_semantics=("parallel", "arbitrary"),
            vmem_limit_bytes=vmem_limit,
        ),
    )(xr)

    mean3 = sums / float(N * HW)                               # (1, C, 1)
    out = _subtract_3d(x, mean3)
    mean4 = mean3.reshape(1, C, 1, 1)
    new_rm = (1.0 - MOMENTUM) * running_mean.astype(jnp.float32) + MOMENTUM * mean4
    return out, new_rm


# --------------------------------------------------------------------------- #
# training wrappers (fused single-pass when the reduction extent fits VMEM)
# --------------------------------------------------------------------------- #
def _volume_norm_train_cvn(x, running_mean, force_two_pass=False):
    """CVN: dims=(0,1). Reduce over N,C; keep (H,W)."""
    N, C, H, W = x.shape
    NC, HW = N * C, H * W
    vmem_limit = _vmem_limit_bytes()
    budget = _block_budget(vmem_limit)

    # Fused path needs the full N*C extent resident per 128-lane column.
    if force_two_pass or NC * 128 * 4 > budget:
        return _cvn_train_two_pass(x, running_mean, vmem_limit, budget)

    # Lane-dense 2-D view: rows = reduced extent (N*C), lanes = kept extent (H*W).
    xr = x.reshape(NC, HW)
    rm = jnp.broadcast_to(running_mean.astype(jnp.float32), (1, 1, H, W)).reshape(1, HW)

    thw = _lane_tile(HW, NC, budget)
    thw = _split_for_grid(HW, thw, 128, 4)
    grid = (pl.cdiv(HW, thw),)

    out2d, new_rm = pl.pallas_call(
        _cvn_train_kernel,
        grid=grid,
        in_specs=[
            pl.BlockSpec((NC, thw), lambda i: (0, i)),
            pl.BlockSpec((1, thw), lambda i: (0, i)),
        ],
        out_specs=[
            pl.BlockSpec((NC, thw), lambda i: (0, i)),
            pl.BlockSpec((1, thw), lambda i: (0, i)),
        ],
        out_shape=(
            jax.ShapeDtypeStruct((NC, HW), x.dtype),
            jax.ShapeDtypeStruct((1, HW), jnp.float32),
        ),
        input_output_aliases={0: 0},
        compiler_params=pltpu.CompilerParams(
            dimension_semantics=("parallel",),
            vmem_limit_bytes=vmem_limit,
        ),
    )(xr, rm)
    return out2d.reshape(N, C, H, W), new_rm.reshape(1, 1, H, W)


def _volume_norm_train_svn(x, running_mean, force_two_pass=False):
    """SVN: dims=(0,2,3). Reduce over N,H,W; keep C."""
    N, C, H, W = x.shape
    HW = H * W
    vmem_limit = _vmem_limit_bytes()
    budget = _block_budget(vmem_limit)

    # Fused path needs N * H*W resident per channel-tile (min 8 channels).
    min_tc = C if C <= 8 else 8
    if force_two_pass or N * min_tc * HW * 4 > budget:
        return _svn_train_two_pass(x, running_mean, vmem_limit, budget)

    # (N, C, H*W) view: spatial stays lane-dense, no transpose of C onto lanes.
    xr = x.reshape(N, C, HW)
    rm = jnp.broadcast_to(running_mean.astype(jnp.float32), (1, C, 1, 1)).reshape(1, C, 1)

    tc = _sublane_tile(C, N * HW * 4, budget)
    tc = _split_for_grid(C, tc, 8, 4)
    grid = (pl.cdiv(C, tc),)

    out3d, new_rm = pl.pallas_call(
        _svn_train_kernel,
        grid=grid,
        in_specs=[
            pl.BlockSpec((N, tc, HW), lambda i: (0, i, 0)),
            pl.BlockSpec((1, tc, 1), lambda i: (0, i, 0)),
        ],
        out_specs=[
            pl.BlockSpec((N, tc, HW), lambda i: (0, i, 0)),
            pl.BlockSpec((1, tc, 1), lambda i: (0, i, 0)),
        ],
        out_shape=(
            jax.ShapeDtypeStruct((N, C, HW), x.dtype),
            jax.ShapeDtypeStruct((1, C, 1), jnp.float32),
        ),
        input_output_aliases={0: 0},
        compiler_params=pltpu.CompilerParams(
            dimension_semantics=("parallel",),
            vmem_limit_bytes=vmem_limit,
        ),
    )(xr, rm)
    return out3d.reshape(N, C, H, W), new_rm.reshape(1, C, 1, 1)


def volume_norm_train(x, running_mean, dims=(0, 1), force_two_pass=False):
    """Training-mode forward. Returns (out, new_running_mean)."""
    dims = tuple(dims)
    if dims == (0, 1):
        return _volume_norm_train_cvn(x, running_mean, force_two_pass)
    if dims == (0, 2, 3):
        return _volume_norm_train_svn(x, running_mean, force_two_pass)
    raise NotImplementedError(f"Unsupported VolumeNorm dims: {dims}")


# --------------------------------------------------------------------------- #
# eval wrapper
# --------------------------------------------------------------------------- #
def volume_norm_eval(x, running_mean):
    """Eval-mode forward: out = x - running_mean (broadcast). Pure streaming subtract.

    running_mean may be (1,1,1,1), (1,1,H,W) (CVN) or (1,C,1,1) (SVN). It is passed
    in its natural shape (no materialized (1,C,H,W) broadcast) and broadcast inside
    the kernel."""
    N, C, H, W = x.shape
    HW = H * W
    rm = running_mean.astype(jnp.float32)
    if rm.ndim != 4:
        raise ValueError(f"running_mean must be 4-D, got shape {rm.shape}")
    _, Crm, Hrm, Wrm = rm.shape
    if (Hrm, Wrm) not in ((1, 1), (H, W)):
        rm = jnp.broadcast_to(rm, (1, Crm, H, W))       # rare irregular shape
        Hrm, Wrm = H, W
    HWrm = Hrm * Wrm

    if Crm == 1:
        return _subtract_2d(x, rm.reshape(1, HWrm))
    if Crm == C:
        return _subtract_3d(x, rm.reshape(1, C, HWrm))
    raise ValueError(f"running_mean channel dim {Crm} incompatible with C={C}")


# --------------------------------------------------------------------------- #
# self-test
# --------------------------------------------------------------------------- #
if __name__ == "__main__":
    key = jax.random.PRNGKey(0)
    x = jax.random.normal(key, (2, 4, 16, 16), dtype=jnp.float32)
    running_mean = jnp.zeros((1, 1, 1, 1), dtype=jnp.float32)  # torch.zeros(1,1,1,1)

    # references
    ref_mean_cvn = jnp.mean(x, axis=(0, 1), keepdims=True)
    ref_out_cvn = x - ref_mean_cvn
    ref_rm_cvn = (1.0 - MOMENTUM) * running_mean + MOMENTUM * ref_mean_cvn
    ref_mean_svn = jnp.mean(x, axis=(0, 2, 3), keepdims=True)
    ref_out_svn = x - ref_mean_svn
    ref_rm_svn = (1.0 - MOMENTUM) * running_mean + MOMENTUM * ref_mean_svn

    # --- training mode, CVN (dims=(0, 1)), fused single-pass ---
    out, new_rm = volume_norm_train(x, running_mean, dims=(0, 1))
    jax.block_until_ready((out, new_rm))
    assert out.shape == x.shape and new_rm.shape == (1, 1, 16, 16)
    assert jnp.allclose(out, ref_out_cvn, atol=1e-5), "CVN fused out mismatch"
    assert jnp.allclose(new_rm, ref_rm_cvn, atol=1e-5), "CVN fused running_mean mismatch"

    # --- training mode, SVN (dims=(0, 2, 3)), fused single-pass ---
    out_svn, new_rm_svn = volume_norm_train(x, running_mean, dims=(0, 2, 3))
    jax.block_until_ready((out_svn, new_rm_svn))
    assert new_rm_svn.shape == (1, 4, 1, 1)
    assert jnp.allclose(out_svn, ref_out_svn, atol=1e-5), "SVN fused out mismatch"
    assert jnp.allclose(new_rm_svn, ref_rm_svn, atol=1e-5), "SVN fused running_mean mismatch"

    # --- training mode, two-pass fallbacks (forced, to validate the grid-reduction path) ---
    out2, new_rm2 = volume_norm_train(x, running_mean, dims=(0, 1), force_two_pass=True)
    jax.block_until_ready((out2, new_rm2))
    assert jnp.allclose(out2, ref_out_cvn, atol=1e-5), "CVN two-pass out mismatch"
    assert jnp.allclose(new_rm2, ref_rm_cvn, atol=1e-5), "CVN two-pass running_mean mismatch"

    out3, new_rm3 = volume_norm_train(x, running_mean, dims=(0, 2, 3), force_two_pass=True)
    jax.block_until_ready((out3, new_rm3))
    assert jnp.allclose(out3, ref_out_svn, atol=1e-5), "SVN two-pass out mismatch"
    assert jnp.allclose(new_rm3, ref_rm_svn, atol=1e-5), "SVN two-pass running_mean mismatch"

    # --- eval mode: scalar (1,1,1,1), CVN-shaped (1,1,H,W), SVN-shaped (1,C,1,1) ---
    out_eval0 = volume_norm_eval(x, running_mean)
    jax.block_until_ready(out_eval0)
    assert jnp.allclose(out_eval0, x, atol=1e-5), "eval-mode (scalar rm) mismatch"

    out_eval1 = volume_norm_eval(x, new_rm)
    jax.block_until_ready(out_eval1)
    assert jnp.allclose(out_eval1, x - new_rm, atol=1e-5), "eval-mode (CVN rm) mismatch"

    out_eval2 = volume_norm_eval(x, new_rm_svn)
    jax.block_until_ready(out_eval2)
    assert jnp.allclose(out_eval2, x - new_rm_svn, atol=1e-5), "eval-mode (SVN rm) mismatch"

    print("KERNEL_OK")
</pallas_src>

<mosaic_0001>
module attributes {stable_mosaic.version = 11 : i64} {
  func.func @_cvn_train_kernel(%arg0: i32, %arg1: memref<8x128xf32, #tpu.memory_space<vmem>>, %arg2: memref<1x128xf32, #tpu.memory_space<vmem>>, %arg3: memref<8x128xf32, #tpu.memory_space<vmem>>, %arg4: memref<1x128xf32, #tpu.memory_space<vmem>>) attributes {dimension_semantics = [#tpu.dimension_semantics<parallel>], iteration_bounds = array<i64: 2>, scalar_prefetch = 0 : i64, scratch_operands = 0 : i64, tpu.core_type = #tpu.core_type<tc>, window_params = [{transform_indices = @transform_0, window_bounds = array<i64: 8, 128>}, {transform_indices = @transform_1, window_bounds = array<i64: 1, 128>}, {transform_indices = @transform_2, window_bounds = array<i64: 8, 128>}, {transform_indices = @transform_3, window_bounds = array<i64: 1, 128>}]} {
    %c0 = arith.constant 0 : index
    %c0_0 = arith.constant 0 : index
    %0 = vector.load %arg1[%c0, %c0_0] : memref<8x128xf32, #tpu.memory_space<vmem>>, vector<8x128xf32>
    %cst = arith.constant dense<0.000000e+00> : vector<128xf32>
    %1 = vector.multi_reduction <add>, %0, %cst [0] : vector<8x128xf32> to vector<128xf32>
    %2 = vector.shape_cast %1 : vector<128xf32> to vector<1x128xf32>
    %cst_1 = arith.constant 8.000000e+00 : f32
    %3 = vector.broadcast %cst_1 : f32 to vector<1x128xf32>
    %4 = arith.divf %2, %3 : vector<1x128xf32>
    %5 = vector.broadcast %4 : vector<1x128xf32> to vector<8x128xf32>
    %6 = arith.subf %0, %5 : vector<8x128xf32>
    %c0_2 = arith.constant 0 : index
    %c0_3 = arith.constant 0 : index
    %7 = vector.load %arg3[%c0_2, %c0_3] : memref<8x128xf32, #tpu.memory_space<vmem>>, vector<8x128xf32>
    tpu.vector_store %arg3[%c0_2, %c0_3], %6 {strides = array<i32>} : memref<8x128xf32, #tpu.memory_space<vmem>>, vector<8x128xf32>,
    %c0_4 = arith.constant 0 : index
    %c0_5 = arith.constant 0 : index
    %8 = vector.load %arg2[%c0_4, %c0_5] : memref<1x128xf32, #tpu.memory_space<vmem>>, vector<1x128xf32>
    %cst_6 = arith.constant 0.899999976 : f32
    %9 = vector.broadcast %cst_6 : f32 to vector<1x128xf32>
    %10 = arith.mulf %9, %8 : vector<1x128xf32>
    %cst_7 = arith.constant 1.000000e-01 : f32
    %11 = vector.broadcast %cst_7 : f32 to vector<1x128xf32>
    %12 = arith.mulf %11, %4 : vector<1x128xf32>
    %13 = arith.addf %10, %12 : vector<1x128xf32>
    %c0_8 = arith.constant 0 : index
    %c0_9 = arith.constant 0 : index
    %14 = vector.load %arg4[%c0_8, %c0_9] : memref<1x128xf32, #tpu.memory_space<vmem>>, vector<1x128xf32>
    tpu.vector_store %arg4[%c0_8, %c0_9], %13 {strides = array<i32>} : memref<1x128xf32, #tpu.memory_space<vmem>>, vector<1x128xf32>,
    return
  }
  func.func @transform_0(%arg0: i32) -> (i32, i32) {
    %c0_i32 = arith.constant 0 : i32
    %c0_i32_0 = arith.constant 0 : i32
    return %c0_i32, %arg0 : i32, i32
  }
  func.func @transform_1(%arg0: i32) -> (i32, i32) {
    %c0_i32 = arith.constant 0 : i32
    %c0_i32_0 = arith.constant 0 : i32
    return %c0_i32, %arg0 : i32, i32
  }
  func.func @transform_2(%arg0: i32) -> (i32, i32) {
    %c0_i32 = arith.constant 0 : i32
    %c0_i32_0 = arith.constant 0 : i32
    return %c0_i32, %arg0 : i32, i32
  }
  func.func @transform_3(%arg0: i32) -> (i32, i32) {
    %c0_i32 = arith.constant 0 : i32
    %c0_i32_0 = arith.constant 0 : i32
    return %c0_i32, %arg0 : i32, i32
  }
}

</mosaic_0001>

<llo_original>
// kernel: tpu_custom_call.1
$region0: #{tpu_custom_call.1}
  #allocation0 [shape = 'u32[]', space=smem, size = 0x4, offset = 0x4, fixed_abs, tag = 'smem constant byte address 0x4 - core index']
  #allocation1 [shape = 'u32[72,128]{1,0:T(1,128)}', space=vmem, size = 0x9000, scoped, tag = 'internal scratch']
  %s0 = inlined_call_operand.hbm [shape: f32[8,256], index: 0, kind: input, shape index: {}, may-alias: {0,2}]
  %s1 = inlined_call_operand.vmem [shape: f32[1,256], index: 1, kind: input, shape index: {}]
  %s2 = inlined_call_operand.hbm [shape: f32[8,256], index: 2, kind: output, shape index: {0}, may-alias: {0,2}]
  %s3 = inlined_call_operand.hbm [shape: f32[1,256], index: 3, kind: output, shape index: {1}]
  %4 = xla_tuple %s2, %s3
  %s5 = sld [smem:[#allocation0]]
  $region53: #{tpu_custom_call.1} parent=0
    _
  %s7 = ssub.s32 1, %s5
  %s8 = scalar_select 0, %s7, %s5
  $region1: #{tpu_custom_call.1} parent=0
    #allocation2 [shape = 'u8[8192]{0}', space=vmem, size = 0x2000, scoped, tag = 'input window, operand 0']
    #allocation3 [shape = 's32[2]{0}', space=sflag, size = 0x8, scoped, tag = 'scoped memory for tpu_custom_call.1']
    #allocation4 [shape = 's32[2]{0}', space=sflag, size = 0x8, scoped, tag = 'scoped memory for tpu_custom_call.1']
    #allocation5 [shape = 'u8[8192]{0}', space=vmem, size = 0x2000, scoped, tag = 'output window, operand 0']
    #allocation6 [shape = 'u8[1024]{0}', space=vmem, size = 0x400, scoped, tag = 'output window, operand 1']
    #allocation7 [shape = 's32[2]{0}', space=sflag, size = 0x8, scoped, tag = 'scoped memory for tpu_custom_call.1']
    %9 = vsyncpa [#allocation3], 0
    %s10 = scalar_lea.sflag [#allocation3], 1
    %11 = vsyncpa %s10, 0
    %12 = vsyncpa [#allocation4], 0
    %s13 = scalar_lea.sflag [#allocation4], 1
    %14 = vsyncpa %s13, 0
    %15 = vsyncpa [#allocation7], 0
    %s16 = scalar_lea.sflag [#allocation7], 1
    %17 = vsyncpa %s16, 0
    loop: start=0, step=1, limit=4
    $region2: #{tpu_custom_call.1} parent=1 // loop_pre_header
      _
    $region3: #{tpu_custom_call.1} parent=1 // loop_header
      %s19 = sphi 0, %s23
      %p20 = scmp.ge.s32.totalorder %s19, 4
      %s29 = sphi 0, %s31
      %s32 = sphi 0, %s29
      %s33 = sphi 0, %s32
      %s49 = sphi 0, %s33
      %s55 = sphi 0, %s57
      %s58 = sphi 0, %s55
      %s59 = sphi 0, %s58
      %s75 = sphi 0, %s59
      %s81 = sphi 0, %s83
      %s84 = sphi 0, %s81
      %s85 = sphi 0, %s84
      %s101 = sphi 0, %s85
      %s107 = sphi 0, %s109
      %s110 = sphi 0, %s107
      %s111 = sphi 0, %s110
      %s127 = sphi 0, %s111
    $region4: #{tpu_custom_call.1} parent=1 // loop_header_branch
      %22 = sbr.rel (%p20) target = $region8
    $region5: #{tpu_custom_call.1} parent=1 // loop_body
      %s24 = ssub.s32 %s19, 1
      %s25 = ssub.s32 %s19, 2
      %s26 = sadd.s32 %s19, 1
      %s27 = ssub.s32 %s19, %s26
      %p28 = scmp.eq.s32.totalorder %s27, 0
      %s30 = sadd.s32 %s29, 1
      %s31 = scalar_select %p28, %s29, %s30
      %p34 = pneg %p28
      %p35 = scmp.eq.s32.totalorder %s19, 1
      %p36 = por %p34, %p35
      %p37 = scmp.ne.s32.totalorder %s29, %s32
      %p38 = scmp.eq.s32.totalorder %s19, 0
      %p39 = por %p37, %p38
      %p40 = scmp.ne.s32.totalorder %s29, %s32
      %p41 = scmp.eq.s32.totalorder %s24, 1
      %p42 = por %p40, %p41
      %p43 = scmp.ne.s32.totalorder %s32, %s33
      %p44 = scmp.eq.s32.totalorder %s24, 0
      %p45 = por %p43, %p44
      %p46 = scmp.ne.s32.totalorder %s32, %s33
      %p47 = scmp.eq.s32.totalorder %s25, 1
      %p48 = por %p46, %p47
      %p50 = scmp.ne.s32.totalorder %s33, %s49
      %p51 = scmp.eq.s32.totalorder %s25, 0
      %p52 = por %p50, %p51
      %s53 = ssub.s32 %s19, %s26
      %p54 = scmp.eq.s32.totalorder %s53, 0
      %s56 = sadd.s32 %s55, 1
      %s57 = scalar_select %p54, %s55, %s56
      %p60 = pneg %p54
      %p61 = scmp.eq.s32.totalorder %s19, 1
      %p62 = por %p60, %p61
      %p63 = scmp.ne.s32.totalorder %s55, %s58
      %p64 = scmp.eq.s32.totalorder %s19, 0
      %p65 = por %p63, %p64
      %p66 = scmp.ne.s32.totalorder %s55, %s58
      %p67 = scmp.eq.s32.totalorder %s24, 1
      %p68 = por %p66, %p67
      %p69 = scmp.ne.s32.totalorder %s58, %s59
      %p70 = scmp.eq.s32.totalorder %s24, 0
      %p71 = por %p69, %p70
      %p72 = scmp.ne.s32.totalorder %s58, %s59
      %p73 = scmp.eq.s32.totalorder %s25, 1
      %p74 = por %p72, %p73
      %p76 = scmp.ne.s32.totalorder %s59, %s75
      %p77 = scmp.eq.s32.totalorder %s25, 0
      %p78 = por %p76, %p77
      %s79 = ssub.s32 %s19, %s26
      %p80 = scmp.eq.s32.totalorder %s79, 0
      %s82 = sadd.s32 %s81, 1
      %s83 = scalar_select %p80, %s81, %s82
      %p86 = pneg %p80
      %p87 = scmp.eq.s32.totalorder %s19, 1
      %p88 = por %p86, %p87
      %p89 = scmp.ne.s32.totalorder %s81, %s84
      %p90 = scmp.eq.s32.totalorder %s19, 0
      %p91 = por %p89, %p90
      %p92 = scmp.ne.s32.totalorder %s81, %s84
      %p93 = scmp.eq.s32.totalorder %s24, 1
      %p94 = por %p92, %p93
      %p95 = scmp.ne.s32.totalorder %s84, %s85
      %p96 = scmp.eq.s32.totalorder %s24, 0
      %p97 = por %p95, %p96
      %p98 = scmp.ne.s32.totalorder %s84, %s85
      %p99 = scmp.eq.s32.totalorder %s25, 1
      %p100 = por %p98, %p99
      %p102 = scmp.ne.s32.totalorder %s85, %s101
      %p103 = scmp.eq.s32.totalorder %s25, 0
      %p104 = por %p102, %p103
      %s105 = ssub.s32 %s19, %s26
      %p106 = scmp.eq.s32.totalorder %s105, 0
      %s108 = sadd.s32 %s107, 1
      %s109 = scalar_select %p106, %s107, %s108
      %p112 = pneg %p106
      %p113 = scmp.eq.s32.totalorder %s19, 1
      %p114 = por %p112, %p113
      %p115 = scmp.ne.s32.totalorder %s107, %s110
      %p116 = scmp.eq.s32.totalorder %s19, 0
      %p117 = por %p115, %p116
      %p118 = scmp.ne.s32.totalorder %s107, %s110
      %p119 = scmp.eq.s32.totalorder %s24, 1
      %p120 = por %p118, %p119
      %p121 = scmp.ne.s32.totalorder %s110, %s111
      %p122 = scmp.eq.s32.totalorder %s24, 0
      %p123 = por %p121, %p122
      %p124 = scmp.ne.s32.totalorder %s110, %s111
      %p125 = scmp.eq.s32.totalorder %s25, 1
      %p126 = por %p124, %p125
      %p128 = scmp.ne.s32.totalorder %s111, %s127
      %p129 = scmp.eq.s32.totalorder %s25, 0
      %p130 = por %p128, %p129
      %p131 = scmp.le.s32.totalorder 1, %s19
      %p132 = scmp.lt.s32.totalorder %s19, 3
      %p133 = pnand %p131, %p132
      %p134 = pneg %p133
      // Predicated region
      $region9: #{tpu_custom_call.1} parent=5 // pred_check
        _
      $region10: #{tpu_custom_call.1} parent=5 // pred_check_branch
        %136 = sbr.rel (%p133) target = $region12
      $region11: #{tpu_custom_call.1} parent=5 // pred_region
        %s137 = ssub.s32 %s19, 1
      $region12: #{tpu_custom_call.1} parent=5 // pred_fallthru
        _
      %p138 = scmp.lt.s32.totalorder %s19, 2
      // Predicated region
      $region13: #{tpu_custom_call.1} parent=5 // pred_check
        %p139 = pneg %p138
      $region14: #{tpu_custom_call.1} parent=5 // pred_check_branch
        %141 = sbr.rel (%p139) target = $region16
      $region15: #{tpu_custom_call.1} parent=5 // pred_region
        // Predicated region
        $region17: #{tpu_custom_call.1} parent=15 // pred_check
          %p142 = pneg %p39
        $region18: #{tpu_custom_call.1} parent=15 // pred_check_branch
          %144 = sbr.rel (%p142) target = $region20
        $region19: #{tpu_custom_call.1} parent=15 // pred_region
          %s145 = sand.u32 %s29, 1
          %s146 = scalar_lea.sflag [#allocation3], %s145
          %s147 = sand.u32 %s29, 1
          %s148 = smul.addr %s147, 8
          %s149 = scalar_lea.vmem [#allocation2], %s148
          %151 = vsyncadd %s146, 0
          %s152 = smul.addr %s19, 8
          %s153 = scalar_lea.hbm %s0, %s152
          %s155 = sshll.u32 %s153, 4
          %s156 = int_to_ptr.hbm [resolvable:$true] %s155
          %s157 = sshll.u32 %s149, 4
          %s158 = int_to_ptr.vmem [resolvable:$true] %s157
          %160 = dma.hbm_to_vmem [thread:$0]  %s156, 128, %s158, %s146
        $region20: #{tpu_custom_call.1} parent=15 // pred_fallthru
          _
        // Predicated region
        $region21: #{tpu_custom_call.1} parent=15 // pred_check
          %p161 = pneg %p65
        $region22: #{tpu_custom_call.1} parent=15 // pred_check_branch
          %163 = sbr.rel (%p161) target = $region24
        $region23: #{tpu_custom_call.1} parent=15 // pred_region
          %p164 = scmp.lt.s32.totalorder %s19, 1
          %s165 = scalar_select %p164, %s19, 1
          %s166 = scalar_lea.vmem %s1, %s165
        $region24: #{tpu_custom_call.1} parent=15 // pred_fallthru
          _
      $region16: #{tpu_custom_call.1} parent=5 // pred_fallthru
        _
      %p167 = scmp.le.s32.totalorder 1, %s19
      %p168 = scmp.lt.s32.totalorder %s19, 3
      %p169 = pnand %p167, %p168
      %p170 = pneg %p169
      // Predicated region
      $region25: #{tpu_custom_call.1} parent=5 // pred_check
        _
      $region26: #{tpu_custom_call.1} parent=5 // pred_check_branch
        %172 = sbr.rel (%p169) target = $region28
      $region27: #{tpu_custom_call.1} parent=5 // pred_region
        %s173 = ssub.s32 %s19, 1
        %s174 = sand.u32 %s32, 1
        %s175 = scalar_lea.sflag [#allocation3], %s174
        %s176 = sand.u32 %s32, 1
        %s177 = smul.addr %s176, 8
        %s178 = scalar_lea.vmem [#allocation2], %s177
        // Predicated region
        $region29: #{tpu_custom_call.1} parent=27 // pred_check
          %p179 = pneg %p45
        $region30: #{tpu_custom_call.1} parent=27 // pred_check_branch
          %181 = sbr.rel (%p179) target = $region32
        $region31: #{tpu_custom_call.1} parent=27 // pred_region
          %183 = dma.done %s175, 128
        $region32: #{tpu_custom_call.1} parent=27 // pred_fallthru
          _
        %s184 = sand.u32 %s32, 1
        %s185 = scalar_lea.sflag [#allocation3], %s184
        %s186 = sand.u32 %s32, 1
        %s187 = smul.addr %s186, 8
        %s188 = scalar_lea.vmem [#allocation2], %s187
        %p189 = pneg %p45
        %p190 = pneg %p42
        %p191 = scmp.lt.s32.totalorder %s24, 1
        %s192 = scalar_select %p191, %s24, 1
        %s193 = scalar_lea.vmem %s1, %s192
        %p194 = pneg %p71
        %p195 = pneg %p68
        %p196 = pneg %p97
        %p197 = pneg %p94
        %s198 = sand.u32 %s84, 1
        %s199 = scalar_lea.sflag [#allocation4], %s198
        %s200 = sand.u32 %s84, 1
        %s201 = smul.addr %s200, 8
        %s202 = scalar_lea.vmem [#allocation5], %s201
        %p203 = pneg %p123
        %p204 = pneg %p120
        %s205 = sand.u32 %s110, 1
        %s206 = scalar_lea.sflag [#allocation7], %s205
        %s207 = sand.u32 %s110, 1
        %s208 = scalar_lea.vmem [#allocation6], %s207
        %p209 = scmp.lt.s32.totalorder %s24, 1
        %s210 = scalar_select %p209, %s24, 1
        %s211 = scalar_lea.vmem %s1, %s210
        %v212 = vld [vmem:[%s178] sm:$0xff]
        %v213 = vrot.slane %v212, 4
        %v214 = vadd.f32 %v212, %v213
        %v215 = vrot.slane %v214, 2
        %v216 = vadd.f32 %v214, %v215
        %v217 = vrot.slane %v216, 1
        %v218 = vadd.f32 %v216, %v217
        %v219 = vrcp.pop 8.0
        %v220 = vmul.f32 8.0, %v219
        %v221 = vsub.f32 1.0, %v220
        %v222 = vmul.f32 %v219, %v221
        %v223 = vadd.f32 %v219, %v222
        %vm224 = vweird.f32 %v219
        %v225 = vsel %vm224, %v219, %v223
        %v226 = vmul.f32 %v218, %v225
        %v227 = vsub.f32 %v212, %v226
        %228 = vst [vmem:[%s202] sm:$0xff] %v227
        %v229 = vld [vmem:[%s211] sm:$0x1]
        %v230 = vmul.f32 %v229, 0.9
        %v231 = vmul.f32 %v226, 0.1
        %v232 = vadd.f32 %v230, %v231
        %233 = vst [vmem:[%s208] sm:$0x1] %v232
        %s234 = sand.u32 %s84, 1
        %s235 = scalar_lea.sflag [#allocation4], %s234
        %s236 = sand.u32 %s84, 1
        %s237 = smul.addr %s236, 8
        %s238 = scalar_lea.vmem [#allocation5], %s237
        %s239 = sand.u32 %s110, 1
        %s240 = scalar_lea.sflag [#allocation7], %s239
        %s241 = sand.u32 %s110, 1
        %s242 = scalar_lea.vmem [#allocation6], %s241
        // Predicated region
        $region33: #{tpu_custom_call.1} parent=27 // pred_check
          %p243 = pneg %p94
        $region34: #{tpu_custom_call.1} parent=27 // pred_check_branch
          %245 = sbr.rel (%p243) target = $region36
        $region35: #{tpu_custom_call.1} parent=27 // pred_region
          %247 = vsyncadd %s235, 0
          %s248 = smul.addr %s24, 8
          %s249 = scalar_lea.hbm %s2, %s248
          %s251 = sshll.u32 %s238, 4
          %s252 = int_to_ptr.vmem [resolvable:$true] %s251
          %s253 = sshll.u32 %s249, 4
          %s254 = int_to_ptr.hbm [resolvable:$true] %s253
          %256 = dma.vmem_to_hbm [thread:$0]  %s252, 128, %s254, %s235
        $region36: #{tpu_custom_call.1} parent=27 // pred_fallthru
          _
        // Predicated region
        $region37: #{tpu_custom_call.1} parent=27 // pred_check
          %p257 = pneg %p120
        $region38: #{tpu_custom_call.1} parent=27 // pred_check_branch
          %259 = sbr.rel (%p257) target = $region40
        $region39: #{tpu_custom_call.1} parent=27 // pred_region
          %261 = vsyncadd %s240, 0
          %s262 = scalar_lea.hbm %s3, %s24
          %s264 = sshll.u32 %s242, 4
          %s265 = int_to_ptr.vmem [resolvable:$true] %s264
          %s266 = sshll.u32 %s262, 4
          %s267 = int_to_ptr.hbm [resolvable:$true] %s266
          %269 = dma.vmem_to_hbm [thread:$0]  %s265, 16, %s267, %s240
        $region40: #{tpu_custom_call.1} parent=27 // pred_fallthru
          _
      $region28: #{tpu_custom_call.1} parent=5 // pred_fallthru
        _
      %p270 = scmp.le.s32.totalorder 2, %s19
      // Predicated region
      $region41: #{tpu_custom_call.1} parent=5 // pred_check
        %p271 = pneg %p270
      $region42: #{tpu_custom_call.1} parent=5 // pred_check_branch
        %273 = sbr.rel (%p271) target = $region44
      $region43: #{tpu_custom_call.1} parent=5 // pred_region
        %s274 = ssub.s32 %s19, 2
        // Predicated region
        $region45: #{tpu_custom_call.1} parent=43 // pred_check
          %p275 = pneg %p100
        $region46: #{tpu_custom_call.1} parent=43 // pred_check_branch
          %277 = sbr.rel (%p275) target = $region48
        $region47: #{tpu_custom_call.1} parent=43 // pred_region
          %s278 = sand.u32 %s85, 1
          %s279 = scalar_lea.sflag [#allocation4], %s278
          %s280 = sand.u32 %s85, 1
          %s281 = smul.addr %s280, 8
          %s282 = scalar_lea.vmem [#allocation5], %s281
          %284 = dma.done %s279, 128
        $region48: #{tpu_custom_call.1} parent=43 // pred_fallthru
          _
        // Predicated region
        $region49: #{tpu_custom_call.1} parent=43 // pred_check
          %p285 = pneg %p126
        $region50: #{tpu_custom_call.1} parent=43 // pred_check_branch
          %287 = sbr.rel (%p285) target = $region52
        $region51: #{tpu_custom_call.1} parent=43 // pred_region
          %s288 = sand.u32 %s111, 1
          %s289 = scalar_lea.sflag [#allocation7], %s288
          %s290 = sand.u32 %s111, 1
          %s291 = scalar_lea.vmem [#allocation6], %s290
          %293 = dma.done %s289, 16
        $region52: #{tpu_custom_call.1} parent=43 // pred_fallthru
          _
      $region44: #{tpu_custom_call.1} parent=5 // pred_fallthru
        _
    $region6: #{tpu_custom_call.1} parent=1 // loop_footer
      %s23 = sadd.s32 1, %s19
    $region7: #{tpu_custom_call.1} parent=1 // loop_footer_branch
      %18 = sbr.rel target = $region3
    $region8: #{tpu_custom_call.1} parent=1 // loop_exit
      _
    %294 = vsyncpa [#allocation3], 1
    %s295 = scalar_lea.sflag [#allocation3], 1
    %296 = vsyncpa %s295, 1
    %297 = vsyncpa [#allocation4], 1
    %s298 = scalar_lea.sflag [#allocation4], 1
    %299 = vsyncpa %s298, 1
    %300 = vsyncpa [#allocation7], 1
    %s301 = scalar_lea.sflag [#allocation7], 1
    %302 = vsyncpa %s301, 1

</llo_original>
